<compile_context>
chip_gen: v7x
topology: tpu7x:2x2x1
jax: 0.10.0
libtpu: 0.0.40
codegen_flags: <defaults>
</compile_context>

<pallas_src>
import functools

import numpy as np
import jax
import jax.numpy as jnp
from jax import lax
from jax.experimental import pallas as pl
from jax.experimental.pallas import tpu as pltpu


def _round_up(a, b):
    return (a + b - 1) // b * b


# -----------------------------------------------------------------------------
# Pallas kernel: one grid step == one tile of anchor rows vs all columns.
# -----------------------------------------------------------------------------
def _triplet_kernel(xr_ref, xc_ref, sqr_ref, sqc_ref, labr_ref, labc_ref,
                    out_ref, *, margin, n_valid):
    tm = xr_ref.shape[0]
    n_pad = xc_ref.shape[0]
    tile = pl.program_id(0)

    # Cross term on the MXU: bf16 operands, f32 accumulation, contraction on D
    # of both operands (x @ x.T without materializing a transpose).
    cross = lax.dot_general(
        xr_ref[...], xc_ref[...],
        dimension_numbers=(((1,), (1,)), ((), ())),
        preferred_element_type=jnp.float32)                    # (tm, n_pad) f32

    dist2 = sqr_ref[...] + sqc_ref[...] - 2.0 * cross          # ||xi - xj||^2
    dist = jnp.sqrt(jnp.maximum(dist2, 1e-12))                 # clamp + sqrt

    # Masks built in-kernel from the tiny label inputs (no N x N HBM traffic).
    same = labr_ref[...] == labc_ref[...]                      # (tm, n_pad) bool
    col_ids = lax.broadcasted_iota(jnp.int32, (tm, n_pad), 1)
    col_valid = col_ids < n_valid                              # drop padded columns
    pos = jnp.logical_and(same, col_valid)                     # diagonal included (matches torch)
    neg = jnp.logical_and(jnp.logical_not(same), col_valid)

    # Batch-hard mining: hardest positive / hardest negative per anchor row.
    dist_ap = jnp.max(jnp.where(pos, dist, -jnp.inf), axis=1, keepdims=True)
    dist_an = jnp.min(jnp.where(neg, dist, jnp.inf), axis=1, keepdims=True)

    row_ids = tile * tm + lax.broadcasted_iota(jnp.int32, (tm, 1), 0)
    row_valid = row_ids < n_valid                              # drop padded rows

    hinge = jnp.maximum(dist_ap - dist_an + jnp.float32(margin), 0.0)
    out_ref[...] = jnp.where(row_valid, hinge, 0.0)            # (tm, 1)


# -----------------------------------------------------------------------------
# Wrapper
# -----------------------------------------------------------------------------
def triplet_loss(inputs, labels, margin=0.8, row_tile=None):
    x = inputs.astype(jnp.float32)
    n, d = x.shape
    labels = labels.reshape(-1).astype(jnp.int32)

    if row_tile is None:
        # Small batches: one grid step (fewer per-step overheads).
        # Large batches: 256-row tiles keep the (TM, N) dist slab modest in VMEM.
        row_tile = 256 if n >= 256 else _round_up(max(n, 8), 8)
    n_pad = _round_up(n, row_tile)
    d_pad = _round_up(d, 128)

    # Zero-pad rows / feature lanes; padded rows & columns are masked in-kernel.
    xp = jnp.zeros((n_pad, d_pad), jnp.float32).at[:n, :d].set(x)
    lp = jnp.zeros((n_pad,), jnp.int32).at[:n].set(labels)

    # bf16 operands for the MXU; squared norms computed from the *same* rounded
    # values so dist^2 stays consistent (and ~0 on the diagonal).
    xb = xp.astype(jnp.bfloat16)
    xf = xb.astype(jnp.float32)
    sq = jnp.sum(xf * xf, axis=1, keepdims=True)               # (n_pad, 1) f32

    grid = (n_pad // row_tile,)
    kernel = functools.partial(_triplet_kernel,
                               margin=float(margin), n_valid=n)

    per_row = pl.pallas_call(
        kernel,
        out_shape=jax.ShapeDtypeStruct((n_pad, 1), jnp.float32),
        grid_spec=pltpu.PrefetchScalarGridSpec(
            num_scalar_prefetch=0,
            grid=grid,
            in_specs=[
                pl.BlockSpec((row_tile, d_pad), lambda i: (i, 0)),   # anchor rows (tiled)
                pl.BlockSpec((n_pad, d_pad), lambda i: (0, 0)),      # all rows (resident, DMA'd once)
                pl.BlockSpec((row_tile, 1), lambda i: (i, 0)),       # row ||x||^2
                pl.BlockSpec((1, n_pad), lambda i: (0, 0)),          # col ||x||^2
                pl.BlockSpec((row_tile, 1), lambda i: (i, 0)),       # row labels
                pl.BlockSpec((1, n_pad), lambda i: (0, 0)),          # col labels
            ],
            out_specs=pl.BlockSpec((row_tile, 1), lambda i: (i, 0)),
        ),
        compiler_params=pltpu.CompilerParams(
            dimension_semantics=("parallel",)),
    )(xb, xb, sq, sq.reshape(1, n_pad), lp.reshape(n_pad, 1),
      lp.reshape(1, n_pad))

    # TODO(synk): final mean over N per-row hinge losses is a tiny reduction done
    #             in the JAX wrapper (keeps the row-tile grid axis fully parallel).
    return jnp.sum(per_row) / jnp.float32(n)


# -----------------------------------------------------------------------------
# Pure numpy reference (mirrors the PyTorch module exactly, in f32).
# -----------------------------------------------------------------------------
def _triplet_reference(x, labels, margin=0.8):
    x = np.asarray(x, np.float32)
    labels = np.asarray(labels)
    n = x.shape[0]
    sq = (x ** 2).sum(axis=1, keepdims=True)
    dist = sq + sq.T - 2.0 * (x @ x.T)
    dist = np.sqrt(np.clip(dist, 1e-12, None))
    mask = labels[:, None] == labels[None, :]
    dist_ap = np.array([dist[i][mask[i]].max() for i in range(n)], np.float32)
    dist_an = np.array([dist[i][~mask[i]].min() for i in range(n)], np.float32)
    return float(np.maximum(dist_ap - dist_an + margin, 0.0).mean())


if __name__ == "__main__":
    key = jax.random.PRNGKey(0)
    N, D, C = 32, 64, 4        # batch=32, hidden=64, 4 identity classes

    feats = jax.random.normal(key, (N, D), dtype=jnp.float32)
    feats = feats / jnp.linalg.norm(feats, axis=1, keepdims=True)
    labels = (jnp.arange(N, dtype=jnp.int32) % C)

    loss = jax.block_until_ready(triplet_loss(feats, labels, margin=0.8))
    ref = _triplet_reference(np.asarray(feats), np.asarray(labels), margin=0.8)

    assert np.isfinite(float(loss)), float(loss)
    # bf16 matmul operands (f32 accumulation) -> allow a few 1e-2 of slack.
    assert abs(float(loss) - float(ref)) < 3e-2 * max(1.0, abs(float(ref))), \
        (float(loss), float(ref))
    print("KERNEL_OK")
</pallas_src>

<mosaic_0001>
module attributes {stable_mosaic.version = 11 : i64} {
  func.func @_triplet_kernel(%arg0: i32, %arg1: memref<32x128xbf16, #tpu.memory_space<vmem>>, %arg2: memref<32x128xbf16, #tpu.memory_space<vmem>>, %arg3: memref<32x1xf32, #tpu.memory_space<vmem>>, %arg4: memref<1x32xf32, #tpu.memory_space<vmem>>, %arg5: memref<32x1xi32, #tpu.memory_space<vmem>>, %arg6: memref<1x32xi32, #tpu.memory_space<vmem>>, %arg7: memref<32x1xf32, #tpu.memory_space<vmem>>) attributes {dimension_semantics = [#tpu.dimension_semantics<parallel>], iteration_bounds = array<i64: 1>, scalar_prefetch = 0 : i64, scratch_operands = 0 : i64, tpu.core_type = #tpu.core_type<tc>, window_params = [{transform_indices = @transform_0, window_bounds = array<i64: 32, 128>}, {pipeline_mode = #tpu.pipeline_mode<synchronous>, transform_indices = @transform_1, window_bounds = array<i64: 32, 128>}, {transform_indices = @transform_2, window_bounds = array<i64: 32, 1>}, {pipeline_mode = #tpu.pipeline_mode<synchronous>, transform_indices = @transform_3, window_bounds = array<i64: 1, 32>}, {transform_indices = @transform_4, window_bounds = array<i64: 32, 1>}, {pipeline_mode = #tpu.pipeline_mode<synchronous>, transform_indices = @transform_5, window_bounds = array<i64: 1, 32>}, {transform_indices = @transform_6, window_bounds = array<i64: 32, 1>}]} {
    %c0 = arith.constant 0 : index
    %c0_0 = arith.constant 0 : index
    %0 = vector.load %arg1[%c0, %c0_0] : memref<32x128xbf16, #tpu.memory_space<vmem>>, vector<32x128xbf16>
    %c0_1 = arith.constant 0 : index
    %c0_2 = arith.constant 0 : index
    %1 = vector.load %arg2[%c0_1, %c0_2] : memref<32x128xbf16, #tpu.memory_space<vmem>>, vector<32x128xbf16>
    %cst = arith.constant dense<0.000000e+00> : vector<32x32xf32>
    %2 = tpu.matmul %0, %1, %cst {dimension_numbers = #tpu.dot_dimension_numbers<[1], [1], [0], [0], [0, 0, 1, 0], [], []>} : vector<32x128xbf16>, vector<32x128xbf16>, vector<32x32xf32> -> vector<32x32xf32>
    %c0_3 = arith.constant 0 : index
    %c0_4 = arith.constant 0 : index
    %3 = vector.load %arg3[%c0_3, %c0_4] : memref<32x1xf32, #tpu.memory_space<vmem>>, vector<32x1xf32>
    %c0_5 = arith.constant 0 : index
    %c0_6 = arith.constant 0 : index
    %4 = vector.load %arg4[%c0_5, %c0_6] : memref<1x32xf32, #tpu.memory_space<vmem>>, vector<1x32xf32>
    %5 = vector.broadcast %3 : vector<32x1xf32> to vector<32x32xf32>
    %6 = vector.broadcast %4 : vector<1x32xf32> to vector<32x32xf32>
    %7 = arith.addf %5, %6 : vector<32x32xf32>
    %cst_7 = arith.constant 2.000000e+00 : f32
    %8 = vector.broadcast %cst_7 : f32 to vector<32x32xf32>
    %9 = arith.mulf %8, %2 : vector<32x32xf32>
    %10 = arith.subf %7, %9 : vector<32x32xf32>
    %cst_8 = arith.constant 9.99999996E-13 : f32
    %11 = vector.broadcast %cst_8 : f32 to vector<32x32xf32>
    %12 = arith.maximumf %10, %11 : vector<32x32xf32>
    %13 = math.sqrt %12 : vector<32x32xf32>
    %c0_9 = arith.constant 0 : index
    %c0_10 = arith.constant 0 : index
    %14 = vector.load %arg5[%c0_9, %c0_10] : memref<32x1xi32, #tpu.memory_space<vmem>>, vector<32x1xi32>
    %c0_11 = arith.constant 0 : index
    %c0_12 = arith.constant 0 : index
    %15 = vector.load %arg6[%c0_11, %c0_12] : memref<1x32xi32, #tpu.memory_space<vmem>>, vector<1x32xi32>
    %16 = vector.broadcast %14 : vector<32x1xi32> to vector<32x32xi32>
    %17 = vector.broadcast %15 : vector<1x32xi32> to vector<32x32xi32>
    %18 = arith.cmpi eq, %16, %17 : vector<32x32xi32>
    %19 = tpu.iota {dimensions = array<i32: 1>} : vector<32x32xi32>
    %c32_i32 = arith.constant 32 : i32
    %20 = vector.broadcast %c32_i32 : i32 to vector<32x32xi32>
    %21 = arith.cmpi slt, %19, %20 : vector<32x32xi32>
    %22 = arith.andi %18, %21 : vector<32x32xi1>
    %cst_13 = arith.constant dense<true> : vector<32x32xi1>
    %23 = arith.xori %18, %cst_13 : vector<32x32xi1>
    %24 = arith.andi %23, %21 : vector<32x32xi1>
    %cst_14 = arith.constant 0xFF800000 : f32
    %25 = vector.broadcast %cst_14 : f32 to vector<32x32xf32>
    %26 = arith.select %22, %13, %25 : vector<32x32xi1>, vector<32x32xf32>
    %cst_15 = arith.constant dense<0xFF800000> : vector<32xf32>
    %27 = vector.multi_reduction <maximumf>, %26, %cst_15 [1] : vector<32x32xf32> to vector<32xf32>
    %28 = vector.shape_cast %27 : vector<32xf32> to vector<32x1xf32>
    %cst_16 = arith.constant 0x7F800000 : f32
    %29 = vector.broadcast %cst_16 : f32 to vector<32x32xf32>
    %30 = arith.select %24, %13, %29 : vector<32x32xi1>, vector<32x32xf32>
    %cst_17 = arith.constant dense<0x7F800000> : vector<32xf32>
    %31 = vector.multi_reduction <minimumf>, %30, %cst_17 [1] : vector<32x32xf32> to vector<32xf32>
    %32 = vector.shape_cast %31 : vector<32xf32> to vector<32x1xf32>
    %c32_i32_18 = arith.constant 32 : i32
    %33 = arith.muli %arg0, %c32_i32_18 : i32
    %34 = tpu.iota {dimensions = array<i32: 0>} : vector<32x1xi32>
    %35 = vector.broadcast %33 : i32 to vector<32x1xi32>
    %36 = arith.addi %35, %34 : vector<32x1xi32>
    %c32_i32_19 = arith.constant 32 : i32
    %37 = vector.broadcast %c32_i32_19 : i32 to vector<32x1xi32>
    %38 = arith.cmpi slt, %36, %37 : vector<32x1xi32>
    %39 = arith.subf %28, %32 : vector<32x1xf32>
    %cst_20 = arith.constant 8.000000e-01 : f32
    %40 = vector.broadcast %cst_20 : f32 to vector<32x1xf32>
    %41 = arith.addf %39, %40 : vector<32x1xf32>
    %cst_21 = arith.constant 0.000000e+00 : f32
    %42 = vector.broadcast %cst_21 : f32 to vector<32x1xf32>
    %43 = arith.maximumf %41, %42 : vector<32x1xf32>
    %cst_22 = arith.constant 0.000000e+00 : f32
    %44 = vector.broadcast %cst_22 : f32 to vector<32x1xf32>
    %45 = arith.select %38, %43, %44 : vector<32x1xi1>, vector<32x1xf32>
    %c0_23 = arith.constant 0 : index
    %c0_24 = arith.constant 0 : index
    %46 = vector.load %arg7[%c0_23, %c0_24] : memref<32x1xf32, #tpu.memory_space<vmem>>, vector<32x1xf32>
    tpu.vector_store %arg7[%c0_23, %c0_24], %45 {strides = array<i32>} : memref<32x1xf32, #tpu.memory_space<vmem>>, vector<32x1xf32>,
    return
  }
  func.func @transform_0(%arg0: i32) -> (i32, i32) {
    %c0_i32 = arith.constant 0 : i32
    %c0_i32_0 = arith.constant 0 : i32
    return %arg0, %c0_i32 : i32, i32
  }
  func.func @transform_1(%arg0: i32) -> (i32, i32) {
    %c0_i32 = arith.constant 0 : i32
    %c0_i32_0 = arith.constant 0 : i32
    %c0_i32_1 = arith.constant 0 : i32
    return %c0_i32, %c0_i32_0 : i32, i32
  }
  func.func @transform_2(%arg0: i32) -> (i32, i32) {
    %c0_i32 = arith.constant 0 : i32
    %c0_i32_0 = arith.constant 0 : i32
    return %arg0, %c0_i32 : i32, i32
  }
  func.func @transform_3(%arg0: i32) -> (i32, i32) {
    %c0_i32 = arith.constant 0 : i32
    %c0_i32_0 = arith.constant 0 : i32
    %c0_i32_1 = arith.constant 0 : i32
    return %c0_i32, %c0_i32_0 : i32, i32
  }
  func.func @transform_4(%arg0: i32) -> (i32, i32) {
    %c0_i32 = arith.constant 0 : i32
    %c0_i32_0 = arith.constant 0 : i32
    return %arg0, %c0_i32 : i32, i32
  }
  func.func @transform_5(%arg0: i32) -> (i32, i32) {
    %c0_i32 = arith.constant 0 : i32
    %c0_i32_0 = arith.constant 0 : i32
    %c0_i32_1 = arith.constant 0 : i32
    return %c0_i32, %c0_i32_0 : i32, i32
  }
  func.func @transform_6(%arg0: i32) -> (i32, i32) {
    %c0_i32 = arith.constant 0 : i32
    %c0_i32_0 = arith.constant 0 : i32
    return %arg0, %c0_i32 : i32, i32
  }
}

</mosaic_0001>

<llo_original>
// kernel: tpu_custom_call.1
$region0: #{tpu_custom_call.1}
  #allocation0 [shape = 'u32[]', space=smem, size = 0x4, offset = 0x4, fixed_abs, tag = 'smem constant byte address 0x4 - core index']
  #allocation1 [shape = 'u32[144,128]{1,0:T(1,128)}', space=vmem, size = 0x12000, scoped, tag = 'internal scratch']
  %s0 = inlined_call_operand.vmem [shape: bf16[32,128], index: 0, kind: input, shape index: {}]
  %s1 = inlined_call_operand.vmem [shape: bf16[32,128], index: 1, kind: input, shape index: {}]
  %s2 = inlined_call_operand.vmem [shape: f32[32,1], index: 2, kind: input, shape index: {}]
  %s3 = inlined_call_operand.vmem [shape: f32[1,32], index: 3, kind: input, shape index: {}]
  %s4 = inlined_call_operand.vmem [shape: s32[32,1], index: 4, kind: input, shape index: {}]
  %s5 = inlined_call_operand.vmem [shape: s32[1,32], index: 5, kind: input, shape index: {}]
  %s6 = inlined_call_operand.vmem [shape: f32[32,1], index: 6, kind: output, shape index: {}]
  %s7 = sld [smem:[#allocation0]]
  $region34: #{tpu_custom_call.1} parent=0
    _
  %s9 = ssub.s32 1, %s7
  %s10 = scalar_select 0, %s9, %s7
  // Predicated region
  $region2: #{tpu_custom_call.1} parent=0 // pred_check
    _
  $region3: #{tpu_custom_call.1} parent=0 // pred_check_branch
    %12 = sbr.rel (0) target = $region5
  $region4: #{tpu_custom_call.1} parent=0 // pred_region
    _
  $region5: #{tpu_custom_call.1} parent=0 // pred_fallthru
    _
  // Predicated region
  $region6: #{tpu_custom_call.1} parent=0 // pred_check
    _
  $region7: #{tpu_custom_call.1} parent=0 // pred_check_branch
    %14 = sbr.rel (0) target = $region9
  $region8: #{tpu_custom_call.1} parent=0 // pred_region
    _
  $region9: #{tpu_custom_call.1} parent=0 // pred_fallthru
    _
  // Predicated region
  $region10: #{tpu_custom_call.1} parent=0 // pred_check
    _
  $region11: #{tpu_custom_call.1} parent=0 // pred_check_branch
    %16 = sbr.rel (0) target = $region13
  $region12: #{tpu_custom_call.1} parent=0 // pred_region
    _
  $region13: #{tpu_custom_call.1} parent=0 // pred_fallthru
    _
  // Predicated region
  $region14: #{tpu_custom_call.1} parent=0 // pred_check
    _
  $region15: #{tpu_custom_call.1} parent=0 // pred_check_branch
    %18 = sbr.rel (0) target = $region17
  $region16: #{tpu_custom_call.1} parent=0 // pred_region
    _
  $region17: #{tpu_custom_call.1} parent=0 // pred_fallthru
    _
  // Predicated region
  $region18: #{tpu_custom_call.1} parent=0 // pred_check
    _
  $region19: #{tpu_custom_call.1} parent=0 // pred_check_branch
    %20 = sbr.rel (0) target = $region21
  $region20: #{tpu_custom_call.1} parent=0 // pred_region
    _
  $region21: #{tpu_custom_call.1} parent=0 // pred_fallthru
    _
  // Predicated region
  $region22: #{tpu_custom_call.1} parent=0 // pred_check
    _
  $region23: #{tpu_custom_call.1} parent=0 // pred_check_branch
    %22 = sbr.rel (0) target = $region25
  $region24: #{tpu_custom_call.1} parent=0 // pred_region
    _
  $region25: #{tpu_custom_call.1} parent=0 // pred_fallthru
    _
  %v24 = vld [vmem:[%s0] sm:$0xf]
  %v25 = vld [vmem:[%s0 + $0x4] sm:$0xf]
  %v26 = vld [vmem:[%s0 + $0x8] sm:$0xf]
  %v27 = vld [vmem:[%s0 + $0xc] sm:$0xf]
  %v28 = vld [vmem:[%s1] sm:$0xf]
  %v29 = vld [vmem:[%s1 + $0x4] sm:$0xf]
  %v30 = vld [vmem:[%s1 + $0x8] sm:$0xf]
  %v31 = vld [vmem:[%s1 + $0xc] sm:$0xf]
  %v36 = vunpack.c.l.b16 %v24
  %v37 = vunpack.c.l.b16 %v25
  %v38 = vunpack.c.l.b16 %v26
  %v39 = vunpack.c.l.b16 %v27
  %v40 = vpack.c.b16 %v37, %v36
  %v41 = vpack.c.b16 %v39, %v38
  %v48 = vunpack.c.l.b16 %v28
  %v49 = vunpack.c.l.b16 %v29
  %v50 = vunpack.c.l.b16 %v30
  %v51 = vunpack.c.l.b16 %v31
  %v52 = vpack.c.b16 %v49, %v48
  %v53 = vpack.c.b16 %v51, %v50
  %56 = vmatprep.subr.bf16.mxu0 0
  %57 = vmatpush1.bf16.xpose.msra.mxu0 %v52
  %58 = vmatprep.subr.bf16.mxu0 0
  %59 = vmatpush1.bf16.xpose.msra.mxu0 %v53
  %60 = vmatprep.subr.bf16.mxu0 0
  %61 = vmatpush1.bf16.xpose.msra.mxu0 0
  %62 = vmatprep.subr.bf16.mxu0 0
  %63 = vmatpush1.bf16.xpose.msra.mxu0 0
  %64 = vmatprep.subr.bf16.mxu0 0
  %65 = vmatpush1.bf16.xpose.msra.mxu0 0
  %66 = vmatprep.subr.bf16.mxu0 0
  %67 = vmatpush1.bf16.xpose.msra.mxu0 0
  %68 = vmatprep.subr.bf16.mxu0 0
  %69 = vmatpush1.bf16.xpose.msra.mxu0 0
  %70 = vmatprep.subr.bf16.mxu0 0
  %71 = vmatpush1.bf16.xpose.msra.mxu0 0
  %72 = vmatprep.subr.bf16.mxu0 0
  %73 = vmatpush1.bf16.xpose.msra.mxu0 0
  %74 = vmatprep.subr.bf16.mxu0 0
  %75 = vmatpush1.bf16.xpose.msra.mxu0 0
  %76 = vmatprep.subr.bf16.mxu0 0
  %77 = vmatpush1.bf16.xpose.msra.mxu0 0
  %78 = vmatprep.subr.bf16.mxu0 0
  %79 = vmatpush1.bf16.xpose.msra.mxu0 0
  %80 = vmatprep.subr.bf16.mxu0 0
  %81 = vmatpush1.bf16.xpose.msra.mxu0 0
  %82 = vmatprep.subr.bf16.mxu0 0
  %83 = vmatpush1.bf16.xpose.msra.mxu0 0
  %84 = vmatprep.subr.bf16.mxu0 0
  %85 = vmatpush1.bf16.xpose.msra.mxu0 0
  %86 = vmatprep.subr.bf16.mxu0 0
  %87 = vmatpush1.bf16.xpose.msra.mxu0 0
  %88 = vmatprep.mubr.bf16.mxu0 0
  %89 = vmatmul.mubr.bf16.gmra.mrb[0].mxu0 %v40
  %v90 = vpop.f32.mrb[0].mxu0
  %v91 = vadd.f32 0.0, %v90
  %v92 = vpop.f32.mrb[0].mxu0
  %v93 = vpop.f32.mrb[0].mxu0
  %v94 = vadd.f32 0.0, %v93
  %v95 = vpop.f32.mrb[0].mxu0
  %96 = vmatprep.mubr.bf16.mxu0 0
  %97 = vmatmul.mubr.bf16.gmra.mrb[0].mxu0 %v41
  %v98 = vpop.f32.mrb[0].mxu0
  %v99 = vadd.f32 0.0, %v98
  %v100 = vpop.f32.mrb[0].mxu0
  %v101 = vpop.f32.mrb[0].mxu0
  %v102 = vadd.f32 0.0, %v101
  %v103 = vpop.f32.mrb[0].mxu0
  %104 = vdwg.mxu0
  %v105 = vld [vmem:[%s2] sm:$0xff]
  %v106 = vld [vmem:[%s2 + $0x8] sm:$0xff]
  %v107 = vld [vmem:[%s2 + $0x10] sm:$0xff]
  %v108 = vld [vmem:[%s2 + $0x18] sm:$0xff]
  %v109 = vld [vmem:[%s3] sm:$0x1]
  %111 = vset.pattern.permute.xlu0 0
  %112 = vperm.xlu0 %111, %v105
  %v113 = vpop.permute.xlu0 %112
  %116 = vset.pattern.permute.xlu0 0
  %117 = vperm.xlu0 %116, %v106
  %v118 = vpop.permute.xlu0 %117
  %121 = vset.pattern.permute.xlu0 0
  %122 = vperm.xlu0 %121, %v107
  %v123 = vpop.permute.xlu0 %122
  %126 = vset.pattern.permute.xlu0 0
  %127 = vperm.xlu0 %126, %v108
  %v128 = vpop.permute.xlu0 %127
  %v131 = vlaneseq
  %v132 = vshrl.u32 %v131, 7
  %v133 = vsub.s32 0, %v132
  %v134 = vrot.slane %v109, %v133
  %v136 = vadd.f32 %v113, %v134
  %v137 = vadd.f32 %v118, %v134
  %v138 = vadd.f32 %v123, %v134
  %v139 = vadd.f32 %v128, %v134
  %v140 = vmul.f32 %v91, 2.0
  %v141 = vmul.f32 %v94, 2.0
  %v142 = vmul.f32 %v99, 2.0
  %v143 = vmul.f32 %v102, 2.0
  %v144 = vsub.f32 %v136, %v140
  %v145 = vsub.f32 %v137, %v141
  %v146 = vsub.f32 %v138, %v142
  %v147 = vsub.f32 %v139, %v143
  %v148 = vmax.f32 %v144, 1e-12
  %v149 = vmax.f32 %v145, 1e-12
  %v150 = vmax.f32 %v146, 1e-12
  %v151 = vmax.f32 %v147, 1e-12
  %v152 = vrsqrt.pop %v148
  %v153 = vmul.f32 %v148, %v152
  %vm154 = vcmp.eq.f32.partialorder %v148, inf
  %v155 = vsel %vm154, %v148, %v153
  %vm156 = vcmp.eq.f32.partialorder %v148, 0.0
  %v157 = vand.u32 %v148, 2147483648
  %v158 = vsel %vm156, %v157, %v155
  %v159 = vrsqrt.pop %v149
  %v160 = vmul.f32 %v149, %v159
  %vm161 = vcmp.eq.f32.partialorder %v149, inf
  %v162 = vsel %vm161, %v149, %v160
  %vm163 = vcmp.eq.f32.partialorder %v149, 0.0
  %v164 = vand.u32 %v149, 2147483648
  %v165 = vsel %vm163, %v164, %v162
  %v166 = vrsqrt.pop %v150
  %v167 = vmul.f32 %v150, %v166
  %vm168 = vcmp.eq.f32.partialorder %v150, inf
  %v169 = vsel %vm168, %v150, %v167
  %vm170 = vcmp.eq.f32.partialorder %v150, 0.0
  %v171 = vand.u32 %v150, 2147483648
  %v172 = vsel %vm170, %v171, %v169
  %v173 = vrsqrt.pop %v151
  %v174 = vmul.f32 %v151, %v173
  %vm175 = vcmp.eq.f32.partialorder %v151, inf
  %v176 = vsel %vm175, %v151, %v174
  %vm177 = vcmp.eq.f32.partialorder %v151, 0.0
  %v178 = vand.u32 %v151, 2147483648
  %v179 = vsel %vm177, %v178, %v176
  %v180 = vld [vmem:[%s4] sm:$0xff]
  %v181 = vld [vmem:[%s4 + $0x8] sm:$0xff]
  %v182 = vld [vmem:[%s4 + $0x10] sm:$0xff]
  %v183 = vld [vmem:[%s4 + $0x18] sm:$0xff]
  %v184 = vld [vmem:[%s5] sm:$0x1]
  %185 = vset.pattern.permute.xlu0 0
  %186 = vperm.xlu0 %185, %v180
  %v187 = vpop.permute.xlu0 %186
  %188 = vset.pattern.permute.xlu0 0
  %189 = vperm.xlu0 %188, %v181
  %v190 = vpop.permute.xlu0 %189
  %191 = vset.pattern.permute.xlu0 0
  %192 = vperm.xlu0 %191, %v182
  %v193 = vpop.permute.xlu0 %192
  %194 = vset.pattern.permute.xlu0 0
  %195 = vperm.xlu0 %194, %v183
  %v196 = vpop.permute.xlu0 %195
  %v197 = vlaneseq
  %v198 = vshrl.u32 %v197, 7
  %v199 = vsub.s32 0, %v198
  %v200 = vrot.slane %v184, %v199
  %vm201 = vcmp.eq.s32.totalorder %v187, %v200
  %vm202 = vcmp.eq.s32.totalorder %v190, %v200
  %vm203 = vcmp.eq.s32.totalorder %v193, %v200
  %vm204 = vcmp.eq.s32.totalorder %v196, %v200
  %v205 = vlaneseq
  %v206 = vand.u32 %v205, 127
  %vm207 = vcmp.lt.s32.totalorder %v206, 32
  %vm208 = vmand %vm201, %vm207
  %vm209 = vmand %vm202, %vm207
  %vm210 = vmand %vm203, %vm207
  %vm211 = vmand %vm204, %vm207
  %vm212 = vmxor %vm201, 1
  %vm213 = vmxor %vm202, 1
  %vm214 = vmxor %vm203, 1
  %vm215 = vmxor %vm204, 1
  %vm216 = vmand %vm212, %vm207
  %vm217 = vmand %vm213, %vm207
  %vm218 = vmand %vm214, %vm207
  %vm219 = vmand %vm215, %vm207
  %v220 = vsel %vm208, %v158, -inf
  %v221 = vsel %vm209, %v165, -inf
  %v222 = vsel %vm210, %v172, -inf
  %v223 = vsel %vm211, %v179, -inf
  %vm224 = vcmask 261120
  %v225 = vsel %vm224, %v220, -inf
  %226 = vmax.xlane.f32.xlu0 %v225
  %v227 = vpop.xlane.xlu0 %226
  %v228 = vsel %vm224, %v221, -inf
  %229 = vmax.xlane.f32.xlu0 %v228
  %v230 = vpop.xlane.xlu0 %229
  %v231 = vsel %vm224, %v222, -inf
  %232 = vmax.xlane.f32.xlu0 %v231
  %v233 = vpop.xlane.xlu0 %232
  %v234 = vsel %vm224, %v223, -inf
  %235 = vmax.xlane.f32.xlu0 %v234
  %v236 = vpop.xlane.xlu0 %235
  %v237 = vsel %vm216, %v158, inf
  %v238 = vsel %vm217, %v165, inf
  %v239 = vsel %vm218, %v172, inf
  %v240 = vsel %vm219, %v179, inf
  %v241 = vsel %vm224, %v237, inf
  %242 = vmin.xlane.f32.xlu0 %v241
  %v243 = vpop.xlane.xlu0 %242
  %v244 = vsel %vm224, %v238, inf
  %245 = vmin.xlane.f32.xlu0 %v244
  %v246 = vpop.xlane.xlu0 %245
  %v247 = vsel %vm224, %v239, inf
  %248 = vmin.xlane.f32.xlu0 %v247
  %v249 = vpop.xlane.xlu0 %248
  %v250 = vsel %vm224, %v240, inf
  %251 = vmin.xlane.f32.xlu0 %v250
  %v252 = vpop.xlane.xlu0 %251
  %s253 = smul.u32 0, 32
  %v254 = vlaneseq
  %v255 = vshrl.u32 %v254, 7
  %v256 = vadd.s32 %v255, 8
  %v257 = vadd.s32 %v255, 16
  %v258 = vadd.s32 %v255, 24
  %v259 = vstv %s253
  %v260 = vadd.s32 %v259, %v255
  %v261 = vadd.s32 %v259, %v256
  %v262 = vadd.s32 %v259, %v257
  %v263 = vadd.s32 %v259, %v258
  %vm264 = vcmp.lt.s32.totalorder %v260, 32
  %vm265 = vcmp.lt.s32.totalorder %v261, 32
  %vm266 = vcmp.lt.s32.totalorder %v262, 32
  %vm267 = vcmp.lt.s32.totalorder %v263, 32
  %v268 = vsub.f32 %v227, %v243
  %v269 = vsub.f32 %v230, %v246
  %v270 = vsub.f32 %v233, %v249
  %v271 = vsub.f32 %v236, %v252
  %v272 = vadd.f32 %v268, 0.8
  %v273 = vadd.f32 %v269, 0.8
  %v274 = vadd.f32 %v270, 0.8
  %v275 = vadd.f32 %v271, 0.8
  %v276 = vmax.f32 %v272, 0.0
  %v277 = vmax.f32 %v273, 0.0
  %v278 = vmax.f32 %v274, 0.0
  %v279 = vmax.f32 %v275, 0.0
  %v280 = vsel %vm264, %v276, 0.0
  %v281 = vsel %vm265, %v277, 0.0
  %v282 = vsel %vm266, %v278, 0.0
  %v283 = vsel %vm267, %v279, 0.0
  %vm284 = vcmask 7168
  %285 = vst.msk [vmem:[%s6] sm:$0xff] %vm284, %v280
  %286 = vst.msk [vmem:[%s6 + $0x8] sm:$0xff] %vm284, %v281
  %287 = vst.msk [vmem:[%s6 + $0x10] sm:$0xff] %vm284, %v282
  %288 = vst.msk [vmem:[%s6 + $0x18] sm:$0xff] %vm284, %v283
  // Predicated region
  $region26: #{tpu_custom_call.1} parent=0 // pred_check
    _
  $region27: #{tpu_custom_call.1} parent=0 // pred_check_branch
    %290 = sbr.rel (0) target = $region29
  $region28: #{tpu_custom_call.1} parent=0 // pred_region
    _
  $region29: #{tpu_custom_call.1} parent=0 // pred_fallthru
    _
  // Predicated region
  $region30: #{tpu_custom_call.1} parent=0 // pred_check
    _
  $region31: #{tpu_custom_call.1} parent=0 // pred_check_branch
    %292 = sbr.rel (0) target = $region33
  $region32: #{tpu_custom_call.1} parent=0 // pred_region
    _
  $region33: #{tpu_custom_call.1} parent=0 // pred_fallthru
    _

</llo_original>
